<compile_context>
chip_gen: v7x
topology: tpu7x:2x2x1
jax: 0.10.0
libtpu: 0.0.40
codegen_flags: <defaults>
</compile_context>

<pallas_src>
import functools

import jax
import jax.numpy as jnp
from jax import lax
from jax.experimental import pallas as pl
from jax.experimental.pallas import tpu as pltpu


def _round_up(x: int, m: int) -> int:
    return (x + m - 1) // m * m


def _round_down(x: int, m: int) -> int:
    return x // m * m


def _vmem_capacity_bytes() -> int:
    try:
        cap = getattr(pltpu.get_tpu_info(), "vmem_capacity_bytes", None)
        if cap:
            return int(cap)
    except Exception:
        pass
    return 64 * 1024 * 1024  # conservative default: assume v7x-class VMEM


def _tda_kernel(x_ref, w_ref, o_ref, acc_ref, *, tile_T, grid_T, rem_T,
                max_value, inv_count):
    """One (tile_R, tile_T) step of the T reduction.

    x_ref:   (tile_R, tile_T)  input tile (may be partially OOB on tail tiles)
    w_ref:   (1, W)            resident decay weights (W = grid_T * tile_T)
    o_ref:   (tile_R, 1)       output tile (written on the last T step)
    acc_ref: (tile_R, 128)     narrow f32 accumulator, resident across T axis
    """
    t_idx = pl.program_id(1)
    n_strips = tile_T // 128

    @pl.when(t_idx == 0)
    def _init():
        acc_ref[...] = jnp.zeros_like(acc_ref)      # cheap: acc is only 128 lanes

    def accumulate(strips):
        # strips: list of (strip_index, valid_lane_count or None) — all static.
        # Single acc load + single acc store per grid step; everything in
        # between is pure VPU dataflow, so the scheduler keeps per-vreg chains
        # in registers instead of re-touching scratch VMEM per input vreg.
        acc = acc_ref[...]
        for j, valid in strips:
            xs = x_ref[:, j * 128:(j + 1) * 128].astype(jnp.float32)  # free view
            start = pl.multiple_of(t_idx * tile_T + j * 128, 128)
            ws = w_ref[:, pl.ds(start, 128)]                          # (1, 128)
            c = jnp.clip(xs * ws, 0.0, max_value)
            if valid is not None:     # static tail mask: kills OOB garbage/NaN
                lane = lax.broadcasted_iota(jnp.int32, c.shape, 1)
                c = jnp.where(lane < valid, c, 0.0)
            acc = acc + c
        acc_ref[...] = acc

    full = [(j, None) for j in range(n_strips)]
    if rem_T == tile_T:
        accumulate(full)                             # every tile is full
    else:
        tail = []
        for j in range(n_strips):
            lo = j * 128
            if lo >= rem_T:
                break                                # strip fully past T: skip
            tail.append((j, None if lo + 128 <= rem_T else rem_T - lo))

        @pl.when(t_idx < grid_T - 1)
        def _body():
            accumulate(full)

        @pl.when(t_idx == grid_T - 1)
        def _tail():
            accumulate(tail)

    @pl.when(t_idx == grid_T - 1)
    def _finalize():
        # Single cross-lane reduce per R tile (XLU), then optional 1/T scale.
        red = jnp.sum(acc_ref[...], axis=1, keepdims=True)           # (tile_R, 1)
        o_ref[...] = (red * inv_count).astype(o_ref.dtype)
        # TODO(synk): a lane-dense (1, tile_R) output (transpose before the
        # store) would avoid masked vst.msk stores; kept columnar since output
        # bytes are only ~1/T of the HBM reads and the relayout adds lowering risk.


def tda_forward(x, *, time_window, max_value, scaling_factor, op="mean"):
    """TDA forward. x: (B, C, T) -> (B, C) float32."""
    if op not in ("mean", "sum"):
        raise ValueError('op must be either "sum" or "mean"')

    B, C, T = x.shape
    R = B * C
    itemsize = jnp.dtype(x.dtype).itemsize

    # ---- generation-aware budgets -------------------------------------------
    vmem_cap = _vmem_capacity_bytes()
    big_vmem = vmem_cap >= 96 * 1024 * 1024          # v5e/v6e: 128 MiB, v7x: 64 MiB
    if big_vmem:
        max_tile_r, max_tile_bytes, vmem_ceiling = 1024, 8 << 20, 64 << 20
    else:
        max_tile_r, max_tile_bytes, vmem_ceiling = 512, 4 << 20, 32 << 20

    # ---- input layout: flatten (B, C) -> R with NO copy ---------------------
    x2d = x.reshape(R, T)
    R_arr, T_arr = max(R, 8), max(T, 128)
    if (R_arr, T_arr) != (R, T):
        # Only for inputs smaller than one (8, 128) hardware tile; negligible.
        x2d = jnp.pad(x2d, ((0, R_arr - R), (0, T_arr - T)))

    # ---- tiling --------------------------------------------------------------
    tile_R = max(8, min(max_tile_r, _round_down(R_arr, 8)))
    if not big_vmem:
        # v7x has 2 TensorCores: ensure the "parallel" R axis has >= 2 tiles.
        while pl.cdiv(R_arr, tile_R) < 2 and tile_R > 8:
            tile_R = max(8, _round_down(tile_R // 2, 8))
    tile_T_budget = max(128, _round_down(max_tile_bytes // (tile_R * itemsize), 128))
    tile_T = max(128, min(_round_down(T_arr, 128), 4096, tile_T_budget))
    grid_R = pl.cdiv(R_arr, tile_R)
    grid_T = pl.cdiv(T_arr, tile_T)                   # reduction (T) axis last
    rem_T = T - (grid_T - 1) * tile_T                 # valid timesteps in last T tile

    # ---- resident decay weights (only T transcendentals, computed once) -----
    W = grid_T * tile_T
    t = jnp.arange(W, dtype=jnp.float32)
    w = (scaling_factor * jnp.exp(-t / float(time_window))).reshape(1, W)

    inv_count = (1.0 / float(T)) if op == "mean" else 1.0
    kernel = functools.partial(
        _tda_kernel, tile_T=tile_T, grid_T=grid_T, rem_T=rem_T,
        max_value=float(max_value), inv_count=inv_count,
    )

    # ---- VMEM budget ---------------------------------------------------------
    vmem_needed = (
        2 * tile_R * tile_T * itemsize    # double-buffered x tiles
        + 2 * W * 4                       # resident decay weights
        + tile_R * 128 * 4                # narrow accumulator scratch
        + 2 * tile_R * 4                  # output tiles
    )
    vmem_limit = int(min(vmem_ceiling, max(32 << 20, 2 * vmem_needed)))

    out = pl.pallas_call(
        kernel,
        out_shape=jax.ShapeDtypeStruct((grid_R * tile_R, 1), jnp.float32),
        grid_spec=pltpu.PrefetchScalarGridSpec(
            num_scalar_prefetch=0,
            grid=(grid_R, grid_T),
            in_specs=[
                pl.BlockSpec((tile_R, tile_T), lambda r, k: (r, k)),
                pl.BlockSpec((1, W), lambda r, k: (0, 0)),   # w stays resident
            ],
            out_specs=pl.BlockSpec((tile_R, 1), lambda r, k: (r, 0)),
            scratch_shapes=[pltpu.VMEM((tile_R, 128), jnp.float32)],
        ),
        compiler_params=pltpu.CompilerParams(
            dimension_semantics=("parallel", "arbitrary"),
            vmem_limit_bytes=vmem_limit,
        ),
    )(x2d, w)

    return out[:R, 0].reshape(B, C)


def _tda_ref(x, *, time_window, max_value, scaling_factor, op="mean"):
    # Pure-JAX reference mirroring the PyTorch module.
    t = jnp.arange(x.shape[2], dtype=jnp.float32)
    w = scaling_factor * jnp.exp(-t / time_window)
    w = w.reshape(1, 1, -1)
    cl = jnp.clip(x.astype(jnp.float32) * w, 0.0, max_value)
    return jnp.mean(cl, axis=2) if op == "mean" else jnp.sum(cl, axis=2)


if __name__ == "__main__":
    key = jax.random.PRNGKey(0)
    B, C, T = 2, 4, 16
    x = jax.random.normal(key, (B, C, T), dtype=jnp.float32)

    ok = True
    for op in ("mean", "sum"):
        params = dict(time_window=5.0, max_value=1.0, scaling_factor=2.0, op=op)
        out = jax.block_until_ready(tda_forward(x, **params))
        ref = _tda_ref(x, **params)
        if out.shape != (B, C) or not jnp.allclose(out, ref, atol=1e-5, rtol=1e-5):
            ok = False
            print(f"MISMATCH for op={op}:", out, ref)

    if ok:
        print("KERNEL_OK")
</pallas_src>

<mosaic_0001>
module attributes {stable_mosaic.version = 11 : i64} {
  func.func @_tda_kernel(%arg0: i32, %arg1: i32, %arg2: memref<8x128xf32, #tpu.memory_space<vmem>>, %arg3: memref<1x128xf32, #tpu.memory_space<vmem>>, %arg4: memref<8x1xf32, #tpu.memory_space<vmem>>, %arg5: memref<8x128xf32, #tpu.memory_space<vmem>>) attributes {dimension_semantics = [#tpu.dimension_semantics<parallel>, #tpu.dimension_semantics<arbitrary>], iteration_bounds = array<i64: 1, 1>, scalar_prefetch = 0 : i64, scratch_operands = 1 : i64, tpu.core_type = #tpu.core_type<tc>, window_params = [{transform_indices = @transform_0, window_bounds = array<i64: 8, 128>}, {pipeline_mode = #tpu.pipeline_mode<synchronous>, transform_indices = @transform_1, window_bounds = array<i64: 1, 128>}, {transform_indices = @transform_2, window_bounds = array<i64: 8, 1>}]} {
    %c0_i32 = arith.constant 0 : i32
    %0 = arith.cmpi eq, %arg1, %c0_i32 : i32
    %1 = arith.extui %0 : i1 to i32
    %c0_i32_0 = arith.constant 0 : i32
    %2 = arith.cmpi ne, %1, %c0_i32_0 : i32
    scf.if %2 {
      %cst = arith.constant 0.000000e+00 : f32
      %12 = vector.broadcast %cst : f32 to vector<8x128xf32>
      %c0 = arith.constant 0 : index
      %c0_7 = arith.constant 0 : index
      %13 = vector.load %arg5[%c0, %c0_7] : memref<8x128xf32, #tpu.memory_space<vmem>>, vector<8x128xf32>
      tpu.vector_store %arg5[%c0, %c0_7], %12 {strides = array<i32>} : memref<8x128xf32, #tpu.memory_space<vmem>>, vector<8x128xf32>,
    } else {
    }
    %c0_i32_1 = arith.constant 0 : i32
    %3 = arith.cmpi slt, %arg1, %c0_i32_1 : i32
    %4 = arith.extui %3 : i1 to i32
    %c0_i32_2 = arith.constant 0 : i32
    %5 = arith.cmpi ne, %4, %c0_i32_2 : i32
    scf.if %5 {
      %c0 = arith.constant 0 : index
      %c0_7 = arith.constant 0 : index
      %12 = vector.load %arg5[%c0, %c0_7] : memref<8x128xf32, #tpu.memory_space<vmem>>, vector<8x128xf32>
      %c0_8 = arith.constant 0 : index
      %c0_9 = arith.constant 0 : index
      %13 = vector.load %arg2[%c0_8, %c0_9] : memref<8x128xf32, #tpu.memory_space<vmem>>, vector<8x128xf32>
      %c128_i32 = arith.constant 128 : i32
      %14 = arith.muli %arg1, %c128_i32 : i32
      %c0_i32_10 = arith.constant 0 : i32
      %15 = arith.addi %14, %c0_i32_10 : i32
      %16 = tpu.assume_multiple %15, 128 : i32
      %c0_11 = arith.constant 0 : index
      %17 = arith.index_cast %16 : i32 to index
      %18 = vector.load %arg3[%c0_11, %17] : memref<1x128xf32, #tpu.memory_space<vmem>>, vector<1x128xf32>
      %19 = vector.broadcast %18 : vector<1x128xf32> to vector<8x128xf32>
      %20 = arith.mulf %13, %19 : vector<8x128xf32>
      %cst = arith.constant 0.000000e+00 : f32
      %cst_12 = arith.constant 1.000000e+00 : f32
      %21 = vector.broadcast %cst : f32 to vector<8x128xf32>
      %22 = arith.maximumf %21, %20 : vector<8x128xf32>
      %23 = vector.broadcast %cst_12 : f32 to vector<8x128xf32>
      %24 = arith.minimumf %23, %22 : vector<8x128xf32>
      %25 = arith.addf %12, %24 : vector<8x128xf32>
      %c0_13 = arith.constant 0 : index
      %c0_14 = arith.constant 0 : index
      %26 = vector.load %arg5[%c0_13, %c0_14] : memref<8x128xf32, #tpu.memory_space<vmem>>, vector<8x128xf32>
      tpu.vector_store %arg5[%c0_13, %c0_14], %25 {strides = array<i32>} : memref<8x128xf32, #tpu.memory_space<vmem>>, vector<8x128xf32>,
    } else {
    }
    %c0_i32_3 = arith.constant 0 : i32
    %6 = arith.cmpi eq, %arg1, %c0_i32_3 : i32
    %7 = arith.extui %6 : i1 to i32
    %c0_i32_4 = arith.constant 0 : i32
    %8 = arith.cmpi ne, %7, %c0_i32_4 : i32
    scf.if %8 {
      %c0 = arith.constant 0 : index
      %c0_7 = arith.constant 0 : index
      %12 = vector.load %arg5[%c0, %c0_7] : memref<8x128xf32, #tpu.memory_space<vmem>>, vector<8x128xf32>
      %c0_8 = arith.constant 0 : index
      %c0_9 = arith.constant 0 : index
      %13 = vector.load %arg2[%c0_8, %c0_9] : memref<8x128xf32, #tpu.memory_space<vmem>>, vector<8x128xf32>
      %c128_i32 = arith.constant 128 : i32
      %14 = arith.muli %arg1, %c128_i32 : i32
      %c0_i32_10 = arith.constant 0 : i32
      %15 = arith.addi %14, %c0_i32_10 : i32
      %16 = tpu.assume_multiple %15, 128 : i32
      %c0_11 = arith.constant 0 : index
      %17 = arith.index_cast %16 : i32 to index
      %18 = vector.load %arg3[%c0_11, %17] : memref<1x128xf32, #tpu.memory_space<vmem>>, vector<1x128xf32>
      %19 = vector.broadcast %18 : vector<1x128xf32> to vector<8x128xf32>
      %20 = arith.mulf %13, %19 : vector<8x128xf32>
      %cst = arith.constant 0.000000e+00 : f32
      %cst_12 = arith.constant 1.000000e+00 : f32
      %21 = vector.broadcast %cst : f32 to vector<8x128xf32>
      %22 = arith.maximumf %21, %20 : vector<8x128xf32>
      %23 = vector.broadcast %cst_12 : f32 to vector<8x128xf32>
      %24 = arith.minimumf %23, %22 : vector<8x128xf32>
      %25 = tpu.iota {dimensions = array<i32: 1>} : vector<8x128xi32>
      %c16_i32 = arith.constant 16 : i32
      %26 = vector.broadcast %c16_i32 : i32 to vector<8x128xi32>
      %27 = arith.cmpi slt, %25, %26 : vector<8x128xi32>
      %cst_13 = arith.constant 0.000000e+00 : f32
      %28 = vector.broadcast %cst_13 : f32 to vector<8x128xf32>
      %29 = arith.select %27, %24, %28 : vector<8x128xi1>, vector<8x128xf32>
      %30 = arith.addf %12, %29 : vector<8x128xf32>
      %c0_14 = arith.constant 0 : index
      %c0_15 = arith.constant 0 : index
      %31 = vector.load %arg5[%c0_14, %c0_15] : memref<8x128xf32, #tpu.memory_space<vmem>>, vector<8x128xf32>
      tpu.vector_store %arg5[%c0_14, %c0_15], %30 {strides = array<i32>} : memref<8x128xf32, #tpu.memory_space<vmem>>, vector<8x128xf32>,
    } else {
    }
    %c0_i32_5 = arith.constant 0 : i32
    %9 = arith.cmpi eq, %arg1, %c0_i32_5 : i32
    %10 = arith.extui %9 : i1 to i32
    %c0_i32_6 = arith.constant 0 : i32
    %11 = arith.cmpi ne, %10, %c0_i32_6 : i32
    scf.if %11 {
      %c0 = arith.constant 0 : index
      %c0_7 = arith.constant 0 : index
      %12 = vector.load %arg5[%c0, %c0_7] : memref<8x128xf32, #tpu.memory_space<vmem>>, vector<8x128xf32>
      %cst = arith.constant dense<0.000000e+00> : vector<8xf32>
      %13 = vector.multi_reduction <add>, %12, %cst [1] : vector<8x128xf32> to vector<8xf32>
      %14 = vector.shape_cast %13 : vector<8xf32> to vector<8x1xf32>
      %cst_8 = arith.constant 6.250000e-02 : f32
      %15 = vector.broadcast %cst_8 : f32 to vector<8x1xf32>
      %16 = arith.mulf %14, %15 : vector<8x1xf32>
      %c0_9 = arith.constant 0 : index
      %c0_10 = arith.constant 0 : index
      %17 = vector.load %arg4[%c0_9, %c0_10] : memref<8x1xf32, #tpu.memory_space<vmem>>, vector<8x1xf32>
      tpu.vector_store %arg4[%c0_9, %c0_10], %16 {strides = array<i32>} : memref<8x1xf32, #tpu.memory_space<vmem>>, vector<8x1xf32>,
    } else {
    }
    return
  }
  func.func @transform_0(%arg0: i32, %arg1: i32) -> (i32, i32) {
    %c0_i32 = arith.constant 0 : i32
    return %arg0, %arg1 : i32, i32
  }
  func.func @transform_1(%arg0: i32, %arg1: i32) -> (i32, i32) {
    %c0_i32 = arith.constant 0 : i32
    %c0_i32_0 = arith.constant 0 : i32
    %c0_i32_1 = arith.constant 0 : i32
    return %c0_i32, %c0_i32_0 : i32, i32
  }
  func.func @transform_2(%arg0: i32, %arg1: i32) -> (i32, i32) {
    %c0_i32 = arith.constant 0 : i32
    %c0_i32_0 = arith.constant 0 : i32
    return %arg0, %c0_i32 : i32, i32
  }
}

</mosaic_0001>

<llo_original>
// kernel: tpu_custom_call.1
$region0: #{tpu_custom_call.1}
  #allocation0 [shape = 'u32[]', space=smem, size = 0x4, offset = 0x4, fixed_abs, tag = 'smem constant byte address 0x4 - core index']
  #allocation1 [shape = 'u32[144,128]{1,0:T(1,128)}', space=vmem, size = 0x12000, scoped, tag = 'internal scratch']
  #allocation2 [shape = 'f32[8,128]{1,0:T(8,128)}', space=vmem, size = 0x1000, scoped, tag = 'scratch operand']
  %s0 = inlined_call_operand.hbm [shape: f32[8,128], index: 0, kind: input, shape index: {}]
  %s1 = inlined_call_operand.vmem [shape: f32[1,128], index: 1, kind: input, shape index: {}]
  %s2 = inlined_call_operand.vmem [shape: f32[8,1], index: 2, kind: output, shape index: {}]
  %s3 = sld [smem:[#allocation0]]
  $region34: #{tpu_custom_call.1} parent=0
    _
  %s5 = ssub.s32 1, %s3
  %s6 = scalar_select 0, %s5, %s3
  $region1: #{tpu_custom_call.1} parent=0
    #allocation3 [shape = 'u8[4096]{0}', space=vmem, size = 0x1000, scoped, tag = 'input window, operand 0, single buffered']
    #allocation4 [shape = 's32[1]{0}', space=sflag, size = 0x4, scoped, tag = 'scoped memory for tpu_custom_call.1']
    %7 = vsyncpa [#allocation4], 0
    // Predicated region
    $region2: #{tpu_custom_call.1} parent=1 // pred_check
      _
    $region3: #{tpu_custom_call.1} parent=1 // pred_check_branch
      %9 = sbr.rel (0) target = $region5
    $region4: #{tpu_custom_call.1} parent=1 // pred_region
      %s11 = ssub.s32 128, 128
      %12 = vsyncadd [#allocation4], %s11
      %s14 = sshll.u32 [#allocation3], 4
      %s15 = int_to_ptr.vmem [resolvable:$true] %s14
      %17 = dma.hbm_to_vmem [thread:$0]  %s0, 128, %s15, [#allocation4]
    $region5: #{tpu_custom_call.1} parent=1 // pred_fallthru
      _
    // Predicated region
    $region6: #{tpu_custom_call.1} parent=1 // pred_check
      _
    $region7: #{tpu_custom_call.1} parent=1 // pred_check_branch
      %19 = sbr.rel (0) target = $region9
    $region8: #{tpu_custom_call.1} parent=1 // pred_region
      _
    $region9: #{tpu_custom_call.1} parent=1 // pred_fallthru
      _
    // Predicated region
    $region10: #{tpu_custom_call.1} parent=1 // pred_check
      _
    $region11: #{tpu_custom_call.1} parent=1 // pred_check_branch
      %21 = sbr.rel (0) target = $region13
    $region12: #{tpu_custom_call.1} parent=1 // pred_region
      %22 = dma.done [#allocation4], 128
    $region13: #{tpu_custom_call.1} parent=1 // pred_fallthru
      _
    %p23 = scmp.eq.s32.totalorder 0, 0
    // Predicated region
    $region14: #{tpu_custom_call.1} parent=1 // pred_check
      %p24 = pneg %p23
    $region15: #{tpu_custom_call.1} parent=1 // pred_check_branch
      %26 = sbr.rel (%p24) target = $region17
    $region16: #{tpu_custom_call.1} parent=1 // pred_region
      %27 = vst [vmem:[#allocation2] sm:$0xff] 0.0
    $region17: #{tpu_custom_call.1} parent=1 // pred_fallthru
      _
    %p28 = scmp.lt.s32.totalorder 0, 0
    // Predicated region
    $region18: #{tpu_custom_call.1} parent=1 // pred_check
      %p29 = pneg %p28
    $region19: #{tpu_custom_call.1} parent=1 // pred_check_branch
      %31 = sbr.rel (%p29) target = $region21
    $region20: #{tpu_custom_call.1} parent=1 // pred_region
      %v32 = vld [vmem:[#allocation2] sm:$0xff]
      %v33 = vld [vmem:[#allocation3] sm:$0xff]
      %s34 = smul.u32 0, 128
      %s35 = sshra.s32 %s34, 7
      %s36 = sand.u32 %s34, 127
      %s37 = scalar_lea.vmem %s1, %s35
      %v38 = vld [vmem:[%s37] sm:$0x1]
      %v40 = vlaneseq
      %v41 = vshrl.u32 %v40, 7
      %v42 = vsub.s32 0, %v41
      %v43 = vrot.slane %v38, %v42
      %v45 = vmul.f32 %v33, %v43
      %v46 = vmax.f32 %v45, 0.0
      %v47 = vmin.f32 %v46, 1.0
      %v48 = vadd.f32 %v32, %v47
      %49 = vst [vmem:[#allocation2] sm:$0xff] %v48
    $region21: #{tpu_custom_call.1} parent=1 // pred_fallthru
      _
    // Predicated region
    $region22: #{tpu_custom_call.1} parent=1 // pred_check
      %p50 = pneg %p23
    $region23: #{tpu_custom_call.1} parent=1 // pred_check_branch
      %52 = sbr.rel (%p50) target = $region25
    $region24: #{tpu_custom_call.1} parent=1 // pred_region
      %v53 = vld [vmem:[#allocation2] sm:$0xff]
      %v54 = vld [vmem:[#allocation3] sm:$0xff]
      %s55 = smul.u32 0, 128
      %s56 = sshra.s32 %s55, 7
      %s57 = sand.u32 %s55, 127
      %s58 = scalar_lea.vmem %s1, %s56
      %v59 = vld [vmem:[%s58] sm:$0x1]
      %v61 = vlaneseq
      %v62 = vshrl.u32 %v61, 7
      %v63 = vsub.s32 0, %v62
      %v64 = vrot.slane %v59, %v63
      %v66 = vmul.f32 %v54, %v64
      %v67 = vmax.f32 %v66, 0.0
      %v68 = vmin.f32 %v67, 1.0
      %v69 = vlaneseq
      %v70 = vand.u32 %v69, 127
      %vm71 = vcmp.lt.s32.totalorder %v70, 16
      %v72 = vsel %vm71, %v68, 0.0
      %v73 = vadd.f32 %v53, %v72
      %74 = vst [vmem:[#allocation2] sm:$0xff] %v73
      %v75 = vld [vmem:[#allocation2] sm:$0xff]
      %76 = vadd.xlane.f32.xlu0 %v75
      %v77 = vpop.xlane.xlu0 %76
      %v78 = vmul.f32 %v77, 0.0625
      %vm79 = vcmask 7168
      %80 = vst.msk [vmem:[%s2] sm:$0xff] %vm79, %v78
    $region25: #{tpu_custom_call.1} parent=1 // pred_fallthru
      _
    // Predicated region
    $region26: #{tpu_custom_call.1} parent=1 // pred_check
      _
    $region27: #{tpu_custom_call.1} parent=1 // pred_check_branch
      %82 = sbr.rel (0) target = $region29
    $region28: #{tpu_custom_call.1} parent=1 // pred_region
      _
    $region29: #{tpu_custom_call.1} parent=1 // pred_fallthru
      _
    // Predicated region
    $region30: #{tpu_custom_call.1} parent=1 // pred_check
      _
    $region31: #{tpu_custom_call.1} parent=1 // pred_check_branch
      %84 = sbr.rel (0) target = $region33
    $region32: #{tpu_custom_call.1} parent=1 // pred_region
      _
    $region33: #{tpu_custom_call.1} parent=1 // pred_fallthru
      _
    %85 = vsyncpa [#allocation4], 1

</llo_original>
